<compile_context>
chip_gen: v7x
topology: tpu7x:2x2x1
jax: 0.10.0
libtpu: 0.0.40
codegen_flags: <defaults>
</compile_context>

<pallas_src>
import numpy as np
import jax
import jax.numpy as jnp
from jax import lax
from jax.experimental import pallas as pl
from jax.experimental.pallas import tpu as pltpu


def _window_matrix(size, k, s, out_size):
    """(out_size, size) matrix with 1/k inside each pooling window."""
    i = np.arange(out_size)[:, None]
    j = np.arange(size)[None, :]
    return ((j >= i * s) & (j < i * s + k)).astype(np.float32) / float(k)


def _varpool_kernel(p_ref, x_ref, o_ref):
    # p_ref : (HoWo, HW)  combined avg-pooling matrix (grid-invariant)
    # x_ref : (TB, HW)    input tile, natural (N*C, H*W) layout
    # o_ref : (HoWo, TB)  variance tile, N*C on the 128-lane axis (lane-dense)
    x = x_ref[...].astype(jnp.float32)
    p = p_ref[...]
    dn = (((1,), (1,)), ((), ()))  # contract the HW axis of both operands
    mu = lax.dot_general(p, x, dn, preferred_element_type=jnp.float32)
    mu_sqr = lax.dot_general(p, x * x, dn, preferred_element_type=jnp.float32)
    # Biased (population) variance, exactly as the PyTorch module computes it.
    o_ref[...] = (mu_sqr - mu * mu).astype(o_ref.dtype)


def _vmem_budget_bytes():
    """Scoped-VMEM budget derived from the actual chip (v7x has only 64 MiB)."""
    try:
        cap = int(pltpu.get_tpu_info().vmem_capacity_bytes)
    except Exception:
        cap = 64 * 1024 * 1024  # conservative: assume the smallest (v7x)
    return int(min(cap // 2, 48 * 1024 * 1024))


def _choose_tile_b(B, HW, HoWo, vmem_budget):
    """Lane-aligned tile over the flattened N*C axis."""
    if B <= 128:
        return B  # single full-extent block (valid without 128 alignment)
    # Per-step f32 footprint:
    #   x tile (double-buffered)   2*TB*HW*4   + in-kernel x*x temp  TB*HW*4
    #   out tile (double-buffered) 2*HoWo*TB*4 + mu/mu_sqr temps   2*HoWo*TB*4
    #   pooling matrix (worst case double-buffered) 2*HoWo*HW*4
    fixed = 2 * HoWo * HW * 4
    per_col = 4 * (3 * HW + 4 * HoWo)
    usable = (vmem_budget * 3) // 4 - fixed
    tb_vmem = max(128, usable // per_col)
    # >= 4 grid steps for big B (2 per v7x TensorCore + per-core pipelining),
    # >= 2 otherwise; 512-2048 lane width is the v5e/v6e sweet spot.
    target_steps = 4 if B > 512 else 2
    tb_steps = max(128, -(-B // target_steps))  # cdiv
    tb = min(2048, tb_vmem, tb_steps)
    return max(128, (tb // 128) * 128)


def varpool2d(x, kernel_size, stride=None):
    """Pallas implementation of VarPool2d.forward for NCHW inputs."""
    kh, kw = (kernel_size, kernel_size) if isinstance(kernel_size, int) else kernel_size
    if stride is None:
        sh, sw = kh, kw
    else:
        sh, sw = (stride, stride) if isinstance(stride, int) else stride

    N, C, H, W = x.shape
    Ho = (H - kh) // sh + 1
    Wo = (W - kw) // sw + 1
    B, HW, HoWo = N * C, H * W, Ho * Wo

    # P[p*Wo + q, h*W + w] = 1/(kh*kw) iff (h, w) lies in output window (p, q).
    p_mat = jnp.asarray(
        np.kron(_window_matrix(H, kh, sh, Ho), _window_matrix(W, kw, sw, Wo)),
        dtype=jnp.float32)                                     # (HoWo, HW)

    x2d = x.reshape(B, HW)                                     # natural layout, no copy pass

    budget = _vmem_budget_bytes()
    TB = _choose_tile_b(B, HW, HoWo, budget)
    grid = (pl.cdiv(B, TB),)                                   # partial last block allowed

    cost = pl.CostEstimate(
        flops=4 * HoWo * HW * B + HW * B + 2 * HoWo * B,
        transcendentals=0,
        bytes_accessed=(B * HW + B * HoWo + HoWo * HW) * 4,
    )

    def build(p_spec):
        return pl.pallas_call(
            _varpool_kernel,
            out_shape=jax.ShapeDtypeStruct((HoWo, B), x.dtype),
            grid_spec=pltpu.PrefetchScalarGridSpec(
                num_scalar_prefetch=0,
                grid=grid,
                in_specs=[
                    p_spec,                                    # pooling matrix (resident)
                    pl.BlockSpec((TB, HW), lambda i: (i, 0)),  # natural-layout input tile
                ],
                out_specs=pl.BlockSpec((HoWo, TB), lambda i: (0, i)),
            ),
            compiler_params=pltpu.CompilerParams(
                dimension_semantics=("parallel",),             # megacore sharding on v7x
                vmem_limit_bytes=budget,
            ),
            cost_estimate=cost,
        )

    p_spec_single = pl.BlockSpec((HoWo, HW), lambda i: (0, 0),
                                 pipeline_mode=pl.Buffered(1))
    p_spec_default = pl.BlockSpec((HoWo, HW), lambda i: (0, 0))
    try:
        # P never changes across the grid -> single-buffer to halve its VMEM.
        out = build(p_spec_single)(p_mat, x2d)
    except Exception:
        # Fallback: default (double-buffered) pipeline mode; functionally identical.
        out = build(p_spec_default)(p_mat, x2d)

    # (HoWo, B) -> (N, C, Ho, Wo): only the small OUTPUT is transposed.
    return out.T.reshape(N, C, Ho, Wo)


def varpool2d_ref(x, kernel_size, stride=None):
    """Plain-JAX reference using reduce_window (matches nn.AvgPool2d semantics)."""
    kh, kw = (kernel_size, kernel_size) if isinstance(kernel_size, int) else kernel_size
    if stride is None:
        sh, sw = kh, kw
    else:
        sh, sw = (stride, stride) if isinstance(stride, int) else stride
    win, strides = (1, 1, kh, kw), (1, 1, sh, sw)
    sum_x = lax.reduce_window(x, 0.0, lax.add, win, strides, "VALID")
    sum_x2 = lax.reduce_window(x * x, 0.0, lax.add, win, strides, "VALID")
    denom = float(kh * kw)
    mu = sum_x / denom
    return sum_x2 / denom - mu * mu


if __name__ == "__main__":
    # VarPool2d has no learned parameters; only kernel_size / stride config.

    # Case 1: the module's reference shape (small batch, single-block path).
    x = jax.random.normal(jax.random.PRNGKey(0), (2, 4, 16, 16), dtype=jnp.float32)
    out = jax.block_until_ready(varpool2d(x, 4, None))
    ref = varpool2d_ref(x, 4, None)
    assert out.shape == (2, 4, 4, 4), out.shape
    np.testing.assert_allclose(np.asarray(out), np.asarray(ref), rtol=1e-5, atol=1e-5)

    # Case 2: larger N*C to exercise the tiled multi-block path
    # (B = 2048 -> TB = 512, grid = (4,), lane-dense stores, no pad pass).
    x2 = jax.random.normal(jax.random.PRNGKey(1), (8, 256, 16, 16), dtype=jnp.float32)
    out2 = jax.block_until_ready(varpool2d(x2, 2, 2))
    ref2 = varpool2d_ref(x2, 2, 2)
    assert out2.shape == (8, 256, 8, 8), out2.shape
    np.testing.assert_allclose(np.asarray(out2), np.asarray(ref2), rtol=1e-5, atol=1e-5)

    # Case 3: B not a multiple of the tile -> exercises the padding-free
    # partial last block (garbage lanes never written back).
    x3 = jax.random.normal(jax.random.PRNGKey(2), (3, 100, 16, 16), dtype=jnp.float32)
    out3 = jax.block_until_ready(varpool2d(x3, 4, 2))
    ref3 = varpool2d_ref(x3, 4, 2)
    assert out3.shape == (3, 100, 7, 7), out3.shape
    np.testing.assert_allclose(np.asarray(out3), np.asarray(ref3), rtol=1e-5, atol=1e-5)

    print("KERNEL_OK")
</pallas_src>

<mosaic_0001>
module attributes {stable_mosaic.version = 11 : i64} {
  func.func @_varpool_kernel(%arg0: i32, %arg1: memref<16x256xf32, #tpu.memory_space<vmem>>, %arg2: memref<8x256xf32, #tpu.memory_space<vmem>>, %arg3: memref<16x8xf32, #tpu.memory_space<vmem>>) attributes {dimension_semantics = [#tpu.dimension_semantics<parallel>], iteration_bounds = array<i64: 1>, scalar_prefetch = 0 : i64, scratch_operands = 0 : i64, tpu.core_type = #tpu.core_type<tc>, window_params = [{pipeline_mode = #tpu.pipeline_mode<synchronous>, transform_indices = @transform_0, window_bounds = array<i64: 16, 256>}, {transform_indices = @transform_1, window_bounds = array<i64: 8, 256>}, {transform_indices = @transform_2, window_bounds = array<i64: 16, 8>}]} {
    %c0 = arith.constant 0 : index
    %c0_0 = arith.constant 0 : index
    %0 = vector.load %arg2[%c0, %c0_0] : memref<8x256xf32, #tpu.memory_space<vmem>>, vector<8x256xf32>
    %c0_1 = arith.constant 0 : index
    %c0_2 = arith.constant 0 : index
    %1 = vector.load %arg1[%c0_1, %c0_2] : memref<16x256xf32, #tpu.memory_space<vmem>>, vector<16x256xf32>
    %cst = arith.constant dense<0.000000e+00> : vector<16x8xf32>
    %2 = tpu.matmul %1, %0, %cst {dimension_numbers = #tpu.dot_dimension_numbers<[1], [1], [0], [0], [0, 0, 1, 0], [], []>} : vector<16x256xf32>, vector<8x256xf32>, vector<16x8xf32> -> vector<16x8xf32>
    %3 = arith.mulf %0, %0 : vector<8x256xf32>
    %cst_3 = arith.constant dense<0.000000e+00> : vector<16x8xf32>
    %4 = tpu.matmul %1, %3, %cst_3 {dimension_numbers = #tpu.dot_dimension_numbers<[1], [1], [0], [0], [0, 0, 1, 0], [], []>} : vector<16x256xf32>, vector<8x256xf32>, vector<16x8xf32> -> vector<16x8xf32>
    %5 = arith.mulf %2, %2 : vector<16x8xf32>
    %6 = arith.subf %4, %5 : vector<16x8xf32>
    %c0_4 = arith.constant 0 : index
    %c0_5 = arith.constant 0 : index
    %7 = vector.load %arg3[%c0_4, %c0_5] : memref<16x8xf32, #tpu.memory_space<vmem>>, vector<16x8xf32>
    tpu.vector_store %arg3[%c0_4, %c0_5], %6 {strides = array<i32>} : memref<16x8xf32, #tpu.memory_space<vmem>>, vector<16x8xf32>,
    return
  }
  func.func @transform_0(%arg0: i32) -> (i32, i32) {
    %c0_i32 = arith.constant 0 : i32
    %c0_i32_0 = arith.constant 0 : i32
    %c0_i32_1 = arith.constant 0 : i32
    return %c0_i32, %c0_i32_0 : i32, i32
  }
  func.func @transform_1(%arg0: i32) -> (i32, i32) {
    %c0_i32 = arith.constant 0 : i32
    %c0_i32_0 = arith.constant 0 : i32
    return %arg0, %c0_i32 : i32, i32
  }
  func.func @transform_2(%arg0: i32) -> (i32, i32) {
    %c0_i32 = arith.constant 0 : i32
    %c0_i32_0 = arith.constant 0 : i32
    return %c0_i32, %arg0 : i32, i32
  }
}

module attributes {stable_mosaic.version = 11 : i64} {
  func.func @_varpool_kernel(%arg0: i32, %arg1: memref<16x256xf32, #tpu.memory_space<vmem>>, %arg2: memref<8x256xf32, #tpu.memory_space<vmem>>, %arg3: memref<16x8xf32, #tpu.memory_space<vmem>>) attributes {dimension_semantics = [#tpu.dimension_semantics<parallel>], iteration_bounds = array<i64: 1>, scalar_prefetch = 0 : i64, scratch_operands = 0 : i64, tpu.core_type = #tpu.core_type<tc>, window_params = [{pipeline_mode = #tpu.pipeline_mode<synchronous>, transform_indices = @transform_0, window_bounds = array<i64: 16, 256>}, {transform_indices = @transform_1, window_bounds = array<i64: 8, 256>}, {transform_indices = @transform_2, window_bounds = array<i64: 16, 8>}]} {
    %c0 = arith.constant 0 : index
    %c0_0 = arith.constant 0 : index
    %0 = vector.load %arg2[%c0, %c0_0] : memref<8x256xf32, #tpu.memory_space<vmem>>, vector<8x256xf32>
    %c0_1 = arith.constant 0 : index
    %c0_2 = arith.constant 0 : index
    %1 = vector.load %arg1[%c0_1, %c0_2] : memref<16x256xf32, #tpu.memory_space<vmem>>, vector<16x256xf32>
    %cst = arith.constant dense<0.000000e+00> : vector<16x8xf32>
    %2 = tpu.matmul %1, %0, %cst {dimension_numbers = #tpu.dot_dimension_numbers<[1], [1], [0], [0], [0, 0, 1, 0], [], []>} : vector<16x256xf32>, vector<8x256xf32>, vector<16x8xf32> -> vector<16x8xf32>
    %3 = arith.mulf %0, %0 : vector<8x256xf32>
    %cst_3 = arith.constant dense<0.000000e+00> : vector<16x8xf32>
    %4 = tpu.matmul %1, %3, %cst_3 {dimension_numbers = #tpu.dot_dimension_numbers<[1], [1], [0], [0], [0, 0, 1, 0], [], []>} : vector<16x256xf32>, vector<8x256xf32>, vector<16x8xf32> -> vector<16x8xf32>
    %5 = arith.mulf %2, %2 : vector<16x8xf32>
    %6 = arith.subf %4, %5 : vector<16x8xf32>
    %c0_4 = arith.constant 0 : index
    %c0_5 = arith.constant 0 : index
    %7 = vector.load %arg3[%c0_4, %c0_5] : memref<16x8xf32, #tpu.memory_space<vmem>>, vector<16x8xf32>
    tpu.vector_store %arg3[%c0_4, %c0_5], %6 {strides = array<i32>} : memref<16x8xf32, #tpu.memory_space<vmem>>, vector<16x8xf32>,
    return
  }
  func.func @transform_0(%arg0: i32) -> (i32, i32) {
    %c0_i32 = arith.constant 0 : i32
    %c0_i32_0 = arith.constant 0 : i32
    %c0_i32_1 = arith.constant 0 : i32
    return %c0_i32, %c0_i32_0 : i32, i32
  }
  func.func @transform_1(%arg0: i32) -> (i32, i32) {
    %c0_i32 = arith.constant 0 : i32
    %c0_i32_0 = arith.constant 0 : i32
    return %arg0, %c0_i32 : i32, i32
  }
  func.func @transform_2(%arg0: i32) -> (i32, i32) {
    %c0_i32 = arith.constant 0 : i32
    %c0_i32_0 = arith.constant 0 : i32
    return %c0_i32, %arg0 : i32, i32
  }
}

</mosaic_0001>

<llo_original>
// kernel: tpu_custom_call.1
$region0: #{tpu_custom_call.1}
  #allocation0 [shape = 'u32[]', space=smem, size = 0x4, offset = 0x4, fixed_abs, tag = 'smem constant byte address 0x4 - core index']
  #allocation1 [shape = 'u32[144,128]{1,0:T(1,128)}', space=vmem, size = 0x12000, scoped, tag = 'internal scratch']
  %s0 = inlined_call_operand.hbm [shape: f32[16,256], index: 0, kind: input, shape index: {}]
  %s1 = inlined_call_operand.hbm [shape: f32[8,256], index: 1, kind: input, shape index: {}]
  %s2 = inlined_call_operand.vmem [shape: f32[16,8], index: 2, kind: output, shape index: {}]
  %s3 = sld [smem:[#allocation0]]
  $region26: #{tpu_custom_call.1} parent=0
    _
  %s5 = ssub.s32 1, %s3
  %s6 = scalar_select 0, %s5, %s3
  $region1: #{tpu_custom_call.1} parent=0
    #allocation2 [shape = 'u8[16384]{0}', space=vmem, size = 0x4000, scoped, tag = 'input window, operand 0, single buffered']
    #allocation3 [shape = 's32[1]{0}', space=sflag, size = 0x4, scoped, tag = 'scoped memory for tpu_custom_call.1']
    #allocation4 [shape = 'u8[8192]{0}', space=vmem, size = 0x2000, scoped, tag = 'input window, operand 1, single buffered']
    #allocation5 [shape = 's32[1]{0}', space=sflag, size = 0x4, scoped, tag = 'scoped memory for tpu_custom_call.1']
    %7 = vsyncpa [#allocation3], 0
    %8 = vsyncpa [#allocation5], 0
    // Predicated region
    $region2: #{tpu_custom_call.1} parent=1 // pred_check
      _
    $region3: #{tpu_custom_call.1} parent=1 // pred_check_branch
      %10 = sbr.rel (0) target = $region5
    $region4: #{tpu_custom_call.1} parent=1 // pred_region
      %s12 = ssub.s32 512, 512
      %13 = vsyncadd [#allocation3], %s12
      %s14 = sshll.u32 [#allocation2], 4
      %s15 = int_to_ptr.vmem [resolvable:$true] %s14
      %20 = dma.hbm_to_vmem [thread:$0]  %s0, 512, %s15, [#allocation3], 256, 256, 16
    $region5: #{tpu_custom_call.1} parent=1 // pred_fallthru
      _
    // Predicated region
    $region6: #{tpu_custom_call.1} parent=1 // pred_check
      _
    $region7: #{tpu_custom_call.1} parent=1 // pred_check_branch
      %22 = sbr.rel (0) target = $region9
    $region8: #{tpu_custom_call.1} parent=1 // pred_region
      %s24 = ssub.s32 256, 256
      %25 = vsyncadd [#allocation5], %s24
      %s27 = sshll.u32 [#allocation4], 4
      %s28 = int_to_ptr.vmem [resolvable:$true] %s27
      %30 = dma.hbm_to_vmem [thread:$0]  %s1, 256, %s28, [#allocation5]
    $region9: #{tpu_custom_call.1} parent=1 // pred_fallthru
      _
    // Predicated region
    $region10: #{tpu_custom_call.1} parent=1 // pred_check
      _
    $region11: #{tpu_custom_call.1} parent=1 // pred_check_branch
      %32 = sbr.rel (0) target = $region13
    $region12: #{tpu_custom_call.1} parent=1 // pred_region
      %33 = dma.done [#allocation3], 512
    $region13: #{tpu_custom_call.1} parent=1 // pred_fallthru
      _
    // Predicated region
    $region14: #{tpu_custom_call.1} parent=1 // pred_check
      _
    $region15: #{tpu_custom_call.1} parent=1 // pred_check_branch
      %35 = sbr.rel (0) target = $region17
    $region16: #{tpu_custom_call.1} parent=1 // pred_region
      %36 = dma.done [#allocation5], 256
    $region17: #{tpu_custom_call.1} parent=1 // pred_fallthru
      _
    %v37 = vld [vmem:[#allocation4] sm:$0xff]
    %v38 = vld [vmem:[#allocation4 + $0x8] sm:$0xff]
    %v39 = vld [vmem:[#allocation2] sm:$0xff]
    %v40 = vld [vmem:[#allocation2 + $0x8] sm:$0xff]
    %v41 = vld [vmem:[#allocation2 + $0x10] sm:$0xff]
    %v42 = vld [vmem:[#allocation2 + $0x18] sm:$0xff]
    %43 = vmatprep.subr.mxu0 %v38
    %44 = vmatpush1.xpose.msra.mxu0 %v37
    %45 = vmatprep.subr.mxu0 0.0
    %46 = vmatpush1.xpose.msra.mxu0 0.0
    %47 = vmatprep.subr.mxu0 0.0
    %48 = vmatpush1.xpose.msra.mxu0 0.0
    %49 = vmatprep.subr.mxu0 0.0
    %50 = vmatpush1.xpose.msra.mxu0 0.0
    %51 = vmatprep.subr.mxu0 0.0
    %52 = vmatpush1.xpose.msra.mxu0 0.0
    %53 = vmatprep.subr.mxu0 0.0
    %54 = vmatpush1.xpose.msra.mxu0 0.0
    %55 = vmatprep.subr.mxu0 0.0
    %56 = vmatpush1.xpose.msra.mxu0 0.0
    %57 = vmatprep.subr.mxu0 0.0
    %58 = vmatpush1.xpose.msra.mxu0 0.0
    %59 = vmatprep.subr.mxu0 0.0
    %60 = vmatpush1.xpose.msra.mxu0 0.0
    %61 = vmatprep.subr.mxu0 0.0
    %62 = vmatpush1.xpose.msra.mxu0 0.0
    %63 = vmatprep.subr.mxu0 0.0
    %64 = vmatpush1.xpose.msra.mxu0 0.0
    %65 = vmatprep.subr.mxu0 0.0
    %66 = vmatpush1.xpose.msra.mxu0 0.0
    %67 = vmatprep.subr.mxu0 0.0
    %68 = vmatpush1.xpose.msra.mxu0 0.0
    %69 = vmatprep.subr.mxu0 0.0
    %70 = vmatpush1.xpose.msra.mxu0 0.0
    %71 = vmatprep.subr.mxu0 0.0
    %72 = vmatpush1.xpose.msra.mxu0 0.0
    %73 = vmatprep.subr.mxu0 0.0
    %74 = vmatpush1.xpose.msra.mxu0 0.0
    %75 = vmatprep.subr.mxu0 0.0
    %76 = vmatpush1.xpose.msra.mxu0 0.0
    %77 = vmatprep.subr.mxu0 0.0
    %78 = vmatpush1.xpose.msra.mxu0 0.0
    %79 = vmatprep.subr.mxu0 0.0
    %80 = vmatpush1.xpose.msra.mxu0 0.0
    %81 = vmatprep.subr.mxu0 0.0
    %82 = vmatpush1.xpose.msra.mxu0 0.0
    %83 = vmatprep.subr.mxu0 0.0
    %84 = vmatpush1.xpose.msra.mxu0 0.0
    %85 = vmatprep.subr.mxu0 0.0
    %86 = vmatpush1.xpose.msra.mxu0 0.0
    %87 = vmatprep.subr.mxu0 0.0
    %88 = vmatpush1.xpose.msra.mxu0 0.0
    %89 = vmatprep.subr.mxu0 0.0
    %90 = vmatpush1.xpose.msra.mxu0 0.0
    %91 = vmatprep.subr.mxu0 0.0
    %92 = vmatpush1.xpose.msra.mxu0 0.0
    %93 = vmatprep.subr.mxu0 0.0
    %94 = vmatpush1.xpose.msra.mxu0 0.0
    %95 = vmatprep.subr.mxu0 0.0
    %96 = vmatpush1.xpose.msra.mxu0 0.0
    %97 = vmatprep.subr.mxu0 0.0
    %98 = vmatpush1.xpose.msra.mxu0 0.0
    %99 = vmatprep.subr.mxu0 0.0
    %100 = vmatpush1.xpose.msra.mxu0 0.0
    %101 = vmatprep.subr.mxu0 0.0
    %102 = vmatpush1.xpose.msra.mxu0 0.0
    %103 = vmatprep.subr.mxu0 0.0
    %104 = vmatpush1.xpose.msra.mxu0 0.0
    %105 = vmatprep.subr.mxu0 0.0
    %106 = vmatpush1.xpose.msra.mxu0 0.0
    %107 = vmatprep.mubr.f32.mxu0 %v40
    %108 = vmatmul.mubr.f32.gmra.mrb[0].mxu0 %v39
    %v109 = vpop.f32.mrb[0].mxu0
    %v110 = vadd.f32 0.0, %v109
    %v111 = vpop.f32.mrb[0].mxu0
    %112 = vmatprep.mubr.f32.mxu0 %v42
    %113 = vmatmul.mubr.f32.gmra.mrb[0].mxu0 %v41
    %v114 = vpop.f32.mrb[0].mxu0
    %v115 = vadd.f32 0.0, %v114
    %v116 = vpop.f32.mrb[0].mxu0
    %117 = vdwg.mxu0
    %v118 = vmul.f32 %v37, %v37
    %v119 = vmul.f32 %v38, %v38
    %120 = vmatprep.subr.mxu0 %v119
    %121 = vmatpush1.xpose.msra.mxu0 %v118
    %122 = vmatprep.subr.mxu0 0.0
    %123 = vmatpush1.xpose.msra.mxu0 0.0
    %124 = vmatprep.subr.mxu0 0.0
    %125 = vmatpush1.xpose.msra.mxu0 0.0
    %126 = vmatprep.subr.mxu0 0.0
    %127 = vmatpush1.xpose.msra.mxu0 0.0
    %128 = vmatprep.subr.mxu0 0.0
    %129 = vmatpush1.xpose.msra.mxu0 0.0
    %130 = vmatprep.subr.mxu0 0.0
    %131 = vmatpush1.xpose.msra.mxu0 0.0
    %132 = vmatprep.subr.mxu0 0.0
    %133 = vmatpush1.xpose.msra.mxu0 0.0
    %134 = vmatprep.subr.mxu0 0.0
    %135 = vmatpush1.xpose.msra.mxu0 0.0
    %136 = vmatprep.subr.mxu0 0.0
    %137 = vmatpush1.xpose.msra.mxu0 0.0
    %138 = vmatprep.subr.mxu0 0.0
    %139 = vmatpush1.xpose.msra.mxu0 0.0
    %140 = vmatprep.subr.mxu0 0.0
    %141 = vmatpush1.xpose.msra.mxu0 0.0
    %142 = vmatprep.subr.mxu0 0.0
    %143 = vmatpush1.xpose.msra.mxu0 0.0
    %144 = vmatprep.subr.mxu0 0.0
    %145 = vmatpush1.xpose.msra.mxu0 0.0
    %146 = vmatprep.subr.mxu0 0.0
    %147 = vmatpush1.xpose.msra.mxu0 0.0
    %148 = vmatprep.subr.mxu0 0.0
    %149 = vmatpush1.xpose.msra.mxu0 0.0
    %150 = vmatprep.subr.mxu0 0.0
    %151 = vmatpush1.xpose.msra.mxu0 0.0
    %152 = vmatprep.subr.mxu0 0.0
    %153 = vmatpush1.xpose.msra.mxu0 0.0
    %154 = vmatprep.subr.mxu0 0.0
    %155 = vmatpush1.xpose.msra.mxu0 0.0
    %156 = vmatprep.subr.mxu0 0.0
    %157 = vmatpush1.xpose.msra.mxu0 0.0
    %158 = vmatprep.subr.mxu0 0.0
    %159 = vmatpush1.xpose.msra.mxu0 0.0
    %160 = vmatprep.subr.mxu0 0.0
    %161 = vmatpush1.xpose.msra.mxu0 0.0
    %162 = vmatprep.subr.mxu0 0.0
    %163 = vmatpush1.xpose.msra.mxu0 0.0
    %164 = vmatprep.subr.mxu0 0.0
    %165 = vmatpush1.xpose.msra.mxu0 0.0
    %166 = vmatprep.subr.mxu0 0.0
    %167 = vmatpush1.xpose.msra.mxu0 0.0
    %168 = vmatprep.subr.mxu0 0.0
    %169 = vmatpush1.xpose.msra.mxu0 0.0
    %170 = vmatprep.subr.mxu0 0.0
    %171 = vmatpush1.xpose.msra.mxu0 0.0
    %172 = vmatprep.subr.mxu0 0.0
    %173 = vmatpush1.xpose.msra.mxu0 0.0
    %174 = vmatprep.subr.mxu0 0.0
    %175 = vmatpush1.xpose.msra.mxu0 0.0
    %176 = vmatprep.subr.mxu0 0.0
    %177 = vmatpush1.xpose.msra.mxu0 0.0
    %178 = vmatprep.subr.mxu0 0.0
    %179 = vmatpush1.xpose.msra.mxu0 0.0
    %180 = vmatprep.subr.mxu0 0.0
    %181 = vmatpush1.xpose.msra.mxu0 0.0
    %182 = vmatprep.subr.mxu0 0.0
    %183 = vmatpush1.xpose.msra.mxu0 0.0
    %184 = vmatprep.mubr.f32.mxu0 %v40
    %185 = vmatmul.mubr.f32.gmra.mrb[0].mxu0 %v39
    %v186 = vpop.f32.mrb[0].mxu0
    %v187 = vadd.f32 0.0, %v186
    %v188 = vpop.f32.mrb[0].mxu0
    %189 = vmatprep.mubr.f32.mxu0 %v42
    %190 = vmatmul.mubr.f32.gmra.mrb[0].mxu0 %v41
    %v191 = vpop.f32.mrb[0].mxu0
    %v192 = vadd.f32 0.0, %v191
    %v193 = vpop.f32.mrb[0].mxu0
    %194 = vdwg.mxu0
    %v195 = vmul.f32 %v110, %v110
    %v196 = vmul.f32 %v115, %v115
    %v197 = vsub.f32 %v187, %v195
    %v198 = vsub.f32 %v192, %v196
    %vm199 = vcmask 64512
    %200 = vst.msk [vmem:[%s2] sm:$0xff] %vm199, %v197
    %201 = vst.msk [vmem:[%s2 + $0x8] sm:$0xff] %vm199, %v198
    // Predicated region
    $region18: #{tpu_custom_call.1} parent=1 // pred_check
      _
    $region19: #{tpu_custom_call.1} parent=1 // pred_check_branch
      %203 = sbr.rel (0) target = $region21
    $region20: #{tpu_custom_call.1} parent=1 // pred_region
      _
    $region21: #{tpu_custom_call.1} parent=1 // pred_fallthru
      _
    // Predicated region
    $region22: #{tpu_custom_call.1} parent=1 // pred_check
      _
    $region23: #{tpu_custom_call.1} parent=1 // pred_check_branch
      %205 = sbr.rel (0) target = $region25
    $region24: #{tpu_custom_call.1} parent=1 // pred_region
      _
    $region25: #{tpu_custom_call.1} parent=1 // pred_fallthru
      _
    %206 = vsyncpa [#allocation3], 1
    %207 = vsyncpa [#allocation5], 1

// kernel: tpu_custom_call.1
$region0: #{tpu_custom_call.1}
  #allocation0 [shape = 'u32[]', space=smem, size = 0x4, offset = 0x4, fixed_abs, tag = 'smem constant byte address 0x4 - core index']
  #allocation1 [shape = 'u32[144,128]{1,0:T(1,128)}', space=vmem, size = 0x12000, scoped, tag = 'internal scratch']
  %s0 = inlined_call_operand.hbm [shape: f32[16,256], index: 0, kind: input, shape index: {}]
  %s1 = inlined_call_operand.hbm [shape: f32[8,256], index: 1, kind: input, shape index: {}]
  %s2 = inlined_call_operand.vmem [shape: f32[16,8], index: 2, kind: output, shape index: {}]
  %s3 = sld [smem:[#allocation0]]
  $region26: #{tpu_custom_call.1} parent=0
    _
  %s5 = ssub.s32 1, %s3
  %s6 = scalar_select 0, %s5, %s3
  $region1: #{tpu_custom_call.1} parent=0
    #allocation2 [shape = 'u8[16384]{0}', space=vmem, size = 0x4000, scoped, tag = 'input window, operand 0, single buffered']
    #allocation3 [shape = 's32[1]{0}', space=sflag, size = 0x4, scoped, tag = 'scoped memory for tpu_custom_call.1']
    #allocation4 [shape = 'u8[8192]{0}', space=vmem, size = 0x2000, scoped, tag = 'input window, operand 1, single buffered']
    #allocation5 [shape = 's32[1]{0}', space=sflag, size = 0x4, scoped, tag = 'scoped memory for tpu_custom_call.1']
    %7 = vsyncpa [#allocation3], 0
    %8 = vsyncpa [#allocation5], 0
    // Predicated region
    $region2: #{tpu_custom_call.1} parent=1 // pred_check
      _
    $region3: #{tpu_custom_call.1} parent=1 // pred_check_branch
      %10 = sbr.rel (0) target = $region5
    $region4: #{tpu_custom_call.1} parent=1 // pred_region
      %s12 = ssub.s32 512, 512
      %13 = vsyncadd [#allocation3], %s12
      %s14 = sshll.u32 [#allocation2], 4
      %s15 = int_to_ptr.vmem [resolvable:$true] %s14
      %20 = dma.hbm_to_vmem [thread:$0]  %s0, 512, %s15, [#allocation3], 256, 256, 16
    $region5: #{tpu_custom_call.1} parent=1 // pred_fallthru
      _
    // Predicated region
    $region6: #{tpu_custom_call.1} parent=1 // pred_check
      _
    $region7: #{tpu_custom_call.1} parent=1 // pred_check_branch
      %22 = sbr.rel (0) target = $region9
    $region8: #{tpu_custom_call.1} parent=1 // pred_region
      %s24 = ssub.s32 256, 256
      %25 = vsyncadd [#allocation5], %s24
      %s27 = sshll.u32 [#allocation4], 4
      %s28 = int_to_ptr.vmem [resolvable:$true] %s27
      %30 = dma.hbm_to_vmem [thread:$0]  %s1, 256, %s28, [#allocation5]
    $region9: #{tpu_custom_call.1} parent=1 // pred_fallthru
      _
    // Predicated region
    $region10: #{tpu_custom_call.1} parent=1 // pred_check
      _
    $region11: #{tpu_custom_call.1} parent=1 // pred_check_branch
      %32 = sbr.rel (0) target = $region13
    $region12: #{tpu_custom_call.1} parent=1 // pred_region
      %33 = dma.done [#allocation3], 512
    $region13: #{tpu_custom_call.1} parent=1 // pred_fallthru
      _
    // Predicated region
    $region14: #{tpu_custom_call.1} parent=1 // pred_check
      _
    $region15: #{tpu_custom_call.1} parent=1 // pred_check_branch
      %35 = sbr.rel (0) target = $region17
    $region16: #{tpu_custom_call.1} parent=1 // pred_region
      %36 = dma.done [#allocation5], 256
    $region17: #{tpu_custom_call.1} parent=1 // pred_fallthru
      _
    %v37 = vld [vmem:[#allocation4] sm:$0xff]
    %v38 = vld [vmem:[#allocation4 + $0x8] sm:$0xff]
    %v39 = vld [vmem:[#allocation2] sm:$0xff]
    %v40 = vld [vmem:[#allocation2 + $0x8] sm:$0xff]
    %v41 = vld [vmem:[#allocation2 + $0x10] sm:$0xff]
    %v42 = vld [vmem:[#allocation2 + $0x18] sm:$0xff]
    %43 = vmatprep.subr.mxu0 %v38
    %44 = vmatpush1.xpose.msra.mxu0 %v37
    %45 = vmatprep.subr.mxu0 0.0
    %46 = vmatpush1.xpose.msra.mxu0 0.0
    %47 = vmatprep.subr.mxu0 0.0
    %48 = vmatpush1.xpose.msra.mxu0 0.0
    %49 = vmatprep.subr.mxu0 0.0
    %50 = vmatpush1.xpose.msra.mxu0 0.0
    %51 = vmatprep.subr.mxu0 0.0
    %52 = vmatpush1.xpose.msra.mxu0 0.0
    %53 = vmatprep.subr.mxu0 0.0
    %54 = vmatpush1.xpose.msra.mxu0 0.0
    %55 = vmatprep.subr.mxu0 0.0
    %56 = vmatpush1.xpose.msra.mxu0 0.0
    %57 = vmatprep.subr.mxu0 0.0
    %58 = vmatpush1.xpose.msra.mxu0 0.0
    %59 = vmatprep.subr.mxu0 0.0
    %60 = vmatpush1.xpose.msra.mxu0 0.0
    %61 = vmatprep.subr.mxu0 0.0
    %62 = vmatpush1.xpose.msra.mxu0 0.0
    %63 = vmatprep.subr.mxu0 0.0
    %64 = vmatpush1.xpose.msra.mxu0 0.0
    %65 = vmatprep.subr.mxu0 0.0
    %66 = vmatpush1.xpose.msra.mxu0 0.0
    %67 = vmatprep.subr.mxu0 0.0
    %68 = vmatpush1.xpose.msra.mxu0 0.0
    %69 = vmatprep.subr.mxu0 0.0
    %70 = vmatpush1.xpose.msra.mxu0 0.0
    %71 = vmatprep.subr.mxu0 0.0
    %72 = vmatpush1.xpose.msra.mxu0 0.0
    %73 = vmatprep.subr.mxu0 0.0
    %74 = vmatpush1.xpose.msra.mxu0 0.0
    %75 = vmatprep.subr.mxu0 0.0
    %76 = vmatpush1.xpose.msra.mxu0 0.0
    %77 = vmatprep.subr.mxu0 0.0
    %78 = vmatpush1.xpose.msra.mxu0 0.0
    %79 = vmatprep.subr.mxu0 0.0
    %80 = vmatpush1.xpose.msra.mxu0 0.0
    %81 = vmatprep.subr.mxu0 0.0
    %82 = vmatpush1.xpose.msra.mxu0 0.0
    %83 = vmatprep.subr.mxu0 0.0
    %84 = vmatpush1.xpose.msra.mxu0 0.0
    %85 = vmatprep.subr.mxu0 0.0
    %86 = vmatpush1.xpose.msra.mxu0 0.0
    %87 = vmatprep.subr.mxu0 0.0
    %88 = vmatpush1.xpose.msra.mxu0 0.0
    %89 = vmatprep.subr.mxu0 0.0
    %90 = vmatpush1.xpose.msra.mxu0 0.0
    %91 = vmatprep.subr.mxu0 0.0
    %92 = vmatpush1.xpose.msra.mxu0 0.0
    %93 = vmatprep.subr.mxu0 0.0
    %94 = vmatpush1.xpose.msra.mxu0 0.0
    %95 = vmatprep.subr.mxu0 0.0
    %96 = vmatpush1.xpose.msra.mxu0 0.0
    %97 = vmatprep.subr.mxu0 0.0
    %98 = vmatpush1.xpose.msra.mxu0 0.0
    %99 = vmatprep.subr.mxu0 0.0
    %100 = vmatpush1.xpose.msra.mxu0 0.0
    %101 = vmatprep.subr.mxu0 0.0
    %102 = vmatpush1.xpose.msra.mxu0 0.0
    %103 = vmatprep.subr.mxu0 0.0
    %104 = vmatpush1.xpose.msra.mxu0 0.0
    %105 = vmatprep.subr.mxu0 0.0
    %106 = vmatpush1.xpose.msra.mxu0 0.0
    %107 = vmatprep.mubr.f32.mxu0 %v40
    %108 = vmatmul.mubr.f32.gmra.mrb[0].mxu0 %v39
    %v109 = vpop.f32.mrb[0].mxu0
    %v110 = vadd.f32 0.0, %v109
    %v111 = vpop.f32.mrb[0].mxu0
    %112 = vmatprep.mubr.f32.mxu0 %v42
    %113 = vmatmul.mubr.f32.gmra.mrb[0].mxu0 %v41
    %v114 = vpop.f32.mrb[0].mxu0
    %v115 = vadd.f32 0.0, %v114
    %v116 = vpop.f32.mrb[0].mxu0
    %117 = vdwg.mxu0
    %v118 = vmul.f32 %v37, %v37
    %v119 = vmul.f32 %v38, %v38
    %120 = vmatprep.subr.mxu0 %v119
    %121 = vmatpush1.xpose.msra.mxu0 %v118
    %122 = vmatprep.subr.mxu0 0.0
    %123 = vmatpush1.xpose.msra.mxu0 0.0
    %124 = vmatprep.subr.mxu0 0.0
    %125 = vmatpush1.xpose.msra.mxu0 0.0
    %126 = vmatprep.subr.mxu0 0.0
    %127 = vmatpush1.xpose.msra.mxu0 0.0
    %128 = vmatprep.subr.mxu0 0.0
    %129 = vmatpush1.xpose.msra.mxu0 0.0
    %130 = vmatprep.subr.mxu0 0.0
    %131 = vmatpush1.xpose.msra.mxu0 0.0
    %132 = vmatprep.subr.mxu0 0.0
    %133 = vmatpush1.xpose.msra.mxu0 0.0
    %134 = vmatprep.subr.mxu0 0.0
    %135 = vmatpush1.xpose.msra.mxu0 0.0
    %136 = vmatprep.subr.mxu0 0.0
    %137 = vmatpush1.xpose.msra.mxu0 0.0
    %138 = vmatprep.subr.mxu0 0.0
    %139 = vmatpush1.xpose.msra.mxu0 0.0
    %140 = vmatprep.subr.mxu0 0.0
    %141 = vmatpush1.xpose.msra.mxu0 0.0
    %142 = vmatprep.subr.mxu0 0.0
    %143 = vmatpush1.xpose.msra.mxu0 0.0
    %144 = vmatprep.subr.mxu0 0.0
    %145 = vmatpush1.xpose.msra.mxu0 0.0
    %146 = vmatprep.subr.mxu0 0.0
    %147 = vmatpush1.xpose.msra.mxu0 0.0
    %148 = vmatprep.subr.mxu0 0.0
    %149 = vmatpush1.xpose.msra.mxu0 0.0
    %150 = vmatprep.subr.mxu0 0.0
    %151 = vmatpush1.xpose.msra.mxu0 0.0
    %152 = vmatprep.subr.mxu0 0.0
    %153 = vmatpush1.xpose.msra.mxu0 0.0
    %154 = vmatprep.subr.mxu0 0.0
    %155 = vmatpush1.xpose.msra.mxu0 0.0
    %156 = vmatprep.subr.mxu0 0.0
    %157 = vmatpush1.xpose.msra.mxu0 0.0
    %158 = vmatprep.subr.mxu0 0.0
    %159 = vmatpush1.xpose.msra.mxu0 0.0
    %160 = vmatprep.subr.mxu0 0.0
    %161 = vmatpush1.xpose.msra.mxu0 0.0
    %162 = vmatprep.subr.mxu0 0.0
    %163 = vmatpush1.xpose.msra.mxu0 0.0
    %164 = vmatprep.subr.mxu0 0.0
    %165 = vmatpush1.xpose.msra.mxu0 0.0
    %166 = vmatprep.subr.mxu0 0.0
    %167 = vmatpush1.xpose.msra.mxu0 0.0
    %168 = vmatprep.subr.mxu0 0.0
    %169 = vmatpush1.xpose.msra.mxu0 0.0
    %170 = vmatprep.subr.mxu0 0.0
    %171 = vmatpush1.xpose.msra.mxu0 0.0
    %172 = vmatprep.subr.mxu0 0.0
    %173 = vmatpush1.xpose.msra.mxu0 0.0
    %174 = vmatprep.subr.mxu0 0.0
    %175 = vmatpush1.xpose.msra.mxu0 0.0
    %176 = vmatprep.subr.mxu0 0.0
    %177 = vmatpush1.xpose.msra.mxu0 0.0
    %178 = vmatprep.subr.mxu0 0.0
    %179 = vmatpush1.xpose.msra.mxu0 0.0
    %180 = vmatprep.subr.mxu0 0.0
    %181 = vmatpush1.xpose.msra.mxu0 0.0
    %182 = vmatprep.subr.mxu0 0.0
    %183 = vmatpush1.xpose.msra.mxu0 0.0
    %184 = vmatprep.mubr.f32.mxu0 %v40
    %185 = vmatmul.mubr.f32.gmra.mrb[0].mxu0 %v39
    %v186 = vpop.f32.mrb[0].mxu0
    %v187 = vadd.f32 0.0, %v186
    %v188 = vpop.f32.mrb[0].mxu0
    %189 = vmatprep.mubr.f32.mxu0 %v42
    %190 = vmatmul.mubr.f32.gmra.mrb[0].mxu0 %v41
    %v191 = vpop.f32.mrb[0].mxu0
    %v192 = vadd.f32 0.0, %v191
    %v193 = vpop.f32.mrb[0].mxu0
    %194 = vdwg.mxu0
    %v195 = vmul.f32 %v110, %v110
    %v196 = vmul.f32 %v115, %v115
    %v197 = vsub.f32 %v187, %v195
    %v198 = vsub.f32 %v192, %v196
    %vm199 = vcmask 64512
    %200 = vst.msk [vmem:[%s2] sm:$0xff] %vm199, %v197
    %201 = vst.msk [vmem:[%s2 + $0x8] sm:$0xff] %vm199, %v198
    // Predicated region
    $region18: #{tpu_custom_call.1} parent=1 // pred_check
      _
    $region19: #{tpu_custom_call.1} parent=1 // pred_check_branch
      %203 = sbr.rel (0) target = $region21
    $region20: #{tpu_custom_call.1} parent=1 // pred_region
      _
    $region21: #{tpu_custom_call.1} parent=1 // pred_fallthru
      _
    // Predicated region
    $region22: #{tpu_custom_call.1} parent=1 // pred_check
      _
    $region23: #{tpu_custom_call.1} parent=1 // pred_check_branch
      %205 = sbr.rel (0) target = $region25
    $region24: #{tpu_custom_call.1} parent=1 // pred_region
      _
    $region25: #{tpu_custom_call.1} parent=1 // pred_fallthru
      _
    %206 = vsyncpa [#allocation3], 1
    %207 = vsyncpa [#allocation5], 1

</llo_original>
